<compile_context>
chip_gen: v7x
topology: tpu7x:2x2x1
jax: 0.10.0
libtpu: 0.0.40
codegen_flags: <defaults>
</compile_context>

<pallas_src>
import math

import jax
import jax.numpy as jnp
import numpy as np
from jax import lax
from jax.experimental import pallas as pl
from jax.experimental.pallas import tpu as pltpu


# ---------------------------------------------------------------------------
# Encoder kernel: h = x@W (VPU), sparse edge scatter (SMEM edge list),
# z = relu(agg * alpha + bias), plus the scalar recon loss (SMEM output).
# ---------------------------------------------------------------------------
def encoder_kernel(x_ref, wt_ref, alpha_ref, src_ref, dst_ref, bias_ref,
                   mean_a_ref, z_ref, loss_ref):
    x = x_ref[...]                                   # [N, F_in]  (VMEM)
    wt = wt_ref[...]                                 # [1, F_in]  (W transposed)
    alpha = alpha_ref[...]                           # [1, K]     exp(edge_attr)
    n = x.shape[0]

    # h = x @ W is an [N,F_in] x [F_in,1] degenerate MXU shape -> keep it on
    # the VPU (elementwise mul) + XLU (lane reduce) instead.
    h = jnp.sum(x * wt, axis=-1, keepdims=True)      # [N, 1]

    # Sparse scatter-add:  agg[dst] += h[src]  for every real edge, plus the
    # self loops added by add_self_loops (agg starts at h).
    row_ids = lax.broadcasted_iota(jnp.int32, (n, 1), 0)

    def edge_body(e, agg):
        s = src_ref[e]                               # SMEM scalar reads
        d = dst_ref[e]
        h_s = jnp.sum(jnp.where(row_ids == s, h, 0.0))    # gather h[s]
        return agg + jnp.where(row_ids == d, h_s, 0.0)    # scatter into agg[d]

    num_edges = src_ref.shape[0]                     # static
    agg = lax.fori_loop(0, num_edges, edge_body, h, unroll=True)   # [N, 1]

    # Broadcast quirk: alpha multiplies every message identically, so it
    # factors out of the scatter and becomes the K feature dim of z.
    z = jnp.maximum(agg * alpha + bias_ref[0, 0], 0.0)    # [N, K]  (ReLU)
    z_ref[...] = z

    # recon_loss = mean(0.5 * (a - z @ z.T))
    #            = 0.5 * (mean(a) - sum(z @ z.T) / N^2)
    # and sum(z @ z.T) == dot(colsum(z), colsum(z))  -> no N^2 work needed.
    col_sum = jnp.sum(z, axis=0, keepdims=True)           # [1, K]
    sum_logits = jnp.sum(col_sum * col_sum)
    loss_ref[0, 0] = 0.5 * (mean_a_ref[0, 0] - sum_logits / (n * n))


# ---------------------------------------------------------------------------
# Decoder kernel: one [tm, tn] tile of sigmoid(z @ z.T).
# ---------------------------------------------------------------------------
def decoder_kernel(zi_ref, zj_ref, adj_ref):
    # logits tile = z_i @ z_j.T   (contract the small K feature dim on the MXU)
    logits = lax.dot_general(
        zi_ref[...], zj_ref[...],
        dimension_numbers=(((1,), (1,)), ((), ())),
        preferred_element_type=jnp.float32)               # [tm, tn]
    # lax.logistic: stable sigmoid, keeps the transcendental on the EUP path.
    adj_ref[...] = jax.nn.sigmoid(logits).astype(adj_ref.dtype)


# ---------------------------------------------------------------------------
# Wrappers
# ---------------------------------------------------------------------------
def _pick_tile(n, pref):
    """Largest tile <= pref that evenly divides n (multiple of 128 when the
    problem is big enough; falls back to full extent for small/awkward N)."""
    if n <= pref:
        return n
    t = (pref // 128) * 128
    while t >= 128:
        if n % t == 0:
            return t
        t -= 128
    return n


def _encode(x, wt, alpha, src, dst, bias, mean_a):
    n = x.shape[0]
    k = alpha.shape[1]
    vmem = pl.BlockSpec(memory_space=pltpu.MemorySpace.VMEM)
    smem = pl.BlockSpec(memory_space=pltpu.MemorySpace.SMEM)
    z, loss = pl.pallas_call(
        encoder_kernel,
        out_shape=(jax.ShapeDtypeStruct((n, k), jnp.float32),   # z
                   jax.ShapeDtypeStruct((1, 1), jnp.float32)),  # recon loss
        in_specs=[vmem, vmem, vmem, smem, smem, smem, smem],
        out_specs=(vmem, smem),
    )(x, wt, alpha, src, dst, bias, mean_a)
    return z, loss


def _decode(z):
    n, k = z.shape
    tm = _pick_tile(n, 256)            # sublane tile of the output
    tn = _pick_tile(n, 512)            # lane-dense output tile at scale
    grid = (n // tm, n // tn)
    # Tile footprint (double-buffered) stays tiny: 2*(tm*k + tn*k + tm*tn)*4B,
    # well within v7x's 64 MiB VMEM for the tile sizes above.
    return pl.pallas_call(
        decoder_kernel,
        out_shape=jax.ShapeDtypeStruct((n, n), jnp.float32),
        grid=grid,
        in_specs=[pl.BlockSpec((tm, k), lambda i, j: (i, 0)),   # z rows (lhs)
                  pl.BlockSpec((tn, k), lambda i, j: (j, 0))],  # z rows (rhs)
        out_specs=pl.BlockSpec((tm, tn), lambda i, j: (i, j)),
        compiler_params=pltpu.CompilerParams(
            dimension_semantics=("parallel", "parallel")),
    )(z, z)


def custom_gae_forward(x, w, alpha, bias, src, dst, a):
    """Full CustomGAE pipeline: encode -> decode -> recon_loss."""
    wt = w.reshape(1, -1)                                  # [1, F_in] for VPU matvec
    # Only the scalar mean(a) goes to the kernel (no [N,N] target DMA).
    mean_a = jnp.mean(a.astype(jnp.float32)).reshape(1, 1)
    z, loss = _encode(x, wt, alpha, src, dst, bias, mean_a)
    adj = _decode(z)
    return adj, loss[0, 0]


if __name__ == "__main__":
    # --- deterministic inputs from the original script ---
    N, F_IN, F_OUT = 4, 5, 1

    x = jnp.array(
        [[35, 21, 42, 52, 3],
         [12, 32, 32, 12, 43],
         [1, 3, 4, 3, 5],
         [4, 5, 3, 19, 5]], dtype=jnp.float32)

    a = jnp.array(
        [[0, 5, 3, 4],
         [0, 0, 2, 0],
         [0, 0, 0, 0],
         [0, 0, 1, 0]], dtype=jnp.float32)

    # edges = nonzero entries of `a` (source, target), matching the 5 edge_attr values
    edges = [(0, 1), (0, 2), (0, 3), (1, 2), (3, 2)]
    edge_attr = np.array([5, 3, 4, 2, 1], dtype=np.float32)

    src = jnp.array([e[0] for e in edges], dtype=jnp.int32)
    dst = jnp.array([e[1] for e in edges], dtype=jnp.int32)

    # alpha = np.exp(edge_attr)  (broadcasts into the feature dim of z)
    alpha = jnp.asarray(np.exp(edge_attr)).reshape(1, -1).astype(jnp.float32)

    # --- deterministic parameter init (glorot weight, zero bias) ---
    key = jax.random.PRNGKey(0)
    limit = math.sqrt(6.0 / (F_IN + F_OUT))
    w = jax.random.uniform(key, (F_IN, F_OUT), jnp.float32, -limit, limit)
    bias = jnp.zeros((1, 1), dtype=jnp.float32)

    adj, loss = jax.jit(custom_gae_forward)(x, w, alpha, bias, src, dst, a)
    jax.block_until_ready((adj, loss))

    # --- pure-JAX reference (same semantics) ---
    h_ref = x @ w                                         # [N, 1]
    scat = np.zeros((N, N), dtype=np.float32)
    for (s, d) in edges + [(i, i) for i in range(N)]:     # edges + self loops
        scat[d, s] += 1.0
    agg_ref = jnp.asarray(scat) @ h_ref                   # [N, 1]
    z_ref = jnp.maximum(agg_ref * alpha + 0.0, 0.0)       # [N, K]
    logits_ref = z_ref @ z_ref.T
    adj_ref = jax.nn.sigmoid(logits_ref)
    loss_ref = jnp.mean(0.5 * (a - logits_ref))

    assert adj.shape == (N, N) and adj.dtype == jnp.float32
    assert loss.shape == () and bool(jnp.isfinite(loss))
    np.testing.assert_allclose(np.asarray(adj), np.asarray(adj_ref),
                               rtol=2e-3, atol=2e-3)
    np.testing.assert_allclose(np.asarray(loss), np.asarray(loss_ref),
                               rtol=1e-3, atol=1e-3 * (1.0 + abs(float(loss_ref))))
    print("KERNEL_OK")
</pallas_src>

<mosaic_0001>
module attributes {stable_mosaic.version = 11 : i64} {
  func.func @encoder_kernel(%arg0: memref<4x5xf32, #tpu.memory_space<vmem>>, %arg1: memref<1x5xf32, #tpu.memory_space<vmem>>, %arg2: memref<1x5xf32, #tpu.memory_space<vmem>>, %arg3: memref<5xi32, #tpu.memory_space<smem>>, %arg4: memref<5xi32, #tpu.memory_space<smem>>, %arg5: memref<1x1xf32, #tpu.memory_space<smem>>, %arg6: memref<1x1xf32, #tpu.memory_space<smem>>, %arg7: memref<4x5xf32, #tpu.memory_space<vmem>>, %arg8: memref<1x1xf32, #tpu.memory_space<smem>>) attributes {dimension_semantics = [], scalar_prefetch = 0 : i64, scratch_operands = 0 : i64, tpu.core_type = #tpu.core_type<tc>} {
    %c0 = arith.constant 0 : index
    %c0_0 = arith.constant 0 : index
    %0 = vector.load %arg0[%c0, %c0_0] : memref<4x5xf32, #tpu.memory_space<vmem>>, vector<4x5xf32>
    %c0_1 = arith.constant 0 : index
    %c0_2 = arith.constant 0 : index
    %1 = vector.load %arg1[%c0_1, %c0_2] : memref<1x5xf32, #tpu.memory_space<vmem>>, vector<1x5xf32>
    %c0_3 = arith.constant 0 : index
    %c0_4 = arith.constant 0 : index
    %2 = vector.load %arg2[%c0_3, %c0_4] : memref<1x5xf32, #tpu.memory_space<vmem>>, vector<1x5xf32>
    %3 = vector.broadcast %1 : vector<1x5xf32> to vector<4x5xf32>
    %4 = arith.mulf %0, %3 : vector<4x5xf32>
    %cst = arith.constant dense<0.000000e+00> : vector<4xf32>
    %5 = vector.multi_reduction <add>, %4, %cst [1] : vector<4x5xf32> to vector<4xf32>
    %6 = vector.shape_cast %5 : vector<4xf32> to vector<4x1xf32>
    %7 = tpu.iota {dimensions = array<i32: 0>} : vector<4x1xi32>
    %c0_i32 = arith.constant 0 : i32
    %8 = arith.index_cast %c0_i32 : i32 to index
    %9 = memref.load %arg3[%8] : memref<5xi32, #tpu.memory_space<smem>>
    %10 = arith.index_cast %c0_i32 : i32 to index
    %11 = memref.load %arg4[%10] : memref<5xi32, #tpu.memory_space<smem>>
    %12 = vector.broadcast %9 : i32 to vector<4x1xi32>
    %13 = arith.cmpi eq, %7, %12 : vector<4x1xi32>
    %cst_5 = arith.constant 0.000000e+00 : f32
    %14 = vector.broadcast %cst_5 : f32 to vector<4x1xf32>
    %15 = arith.select %13, %6, %14 : vector<4x1xi1>, vector<4x1xf32>
    %16 = vector.shape_cast %15 : vector<4x1xf32> to vector<1x4x1xf32>
    %cst_6 = arith.constant dense<0.000000e+00> : vector<1xf32>
    %17 = vector.multi_reduction <add>, %16, %cst_6 [1, 2] : vector<1x4x1xf32> to vector<1xf32>
    %18 = vector.shape_cast %17 : vector<1xf32> to vector<1x1x1xf32>
    %19 = vector.extract %18[0, 0, 0] : f32 from vector<1x1x1xf32>
    %20 = vector.broadcast %11 : i32 to vector<4x1xi32>
    %21 = arith.cmpi eq, %7, %20 : vector<4x1xi32>
    %cst_7 = arith.constant 0.000000e+00 : f32
    %22 = vector.broadcast %19 : f32 to vector<4x1xf32>
    %23 = vector.broadcast %cst_7 : f32 to vector<4x1xf32>
    %24 = arith.select %21, %22, %23 : vector<4x1xi1>, vector<4x1xf32>
    %25 = arith.addf %6, %24 : vector<4x1xf32>
    %c1_i32 = arith.constant 1 : i32
    %26 = arith.index_cast %c1_i32 : i32 to index
    %27 = memref.load %arg3[%26] : memref<5xi32, #tpu.memory_space<smem>>
    %28 = arith.index_cast %c1_i32 : i32 to index
    %29 = memref.load %arg4[%28] : memref<5xi32, #tpu.memory_space<smem>>
    %30 = vector.broadcast %27 : i32 to vector<4x1xi32>
    %31 = arith.cmpi eq, %7, %30 : vector<4x1xi32>
    %cst_8 = arith.constant 0.000000e+00 : f32
    %32 = vector.broadcast %cst_8 : f32 to vector<4x1xf32>
    %33 = arith.select %31, %6, %32 : vector<4x1xi1>, vector<4x1xf32>
    %34 = vector.shape_cast %33 : vector<4x1xf32> to vector<1x4x1xf32>
    %cst_9 = arith.constant dense<0.000000e+00> : vector<1xf32>
    %35 = vector.multi_reduction <add>, %34, %cst_9 [1, 2] : vector<1x4x1xf32> to vector<1xf32>
    %36 = vector.shape_cast %35 : vector<1xf32> to vector<1x1x1xf32>
    %37 = vector.extract %36[0, 0, 0] : f32 from vector<1x1x1xf32>
    %38 = vector.broadcast %29 : i32 to vector<4x1xi32>
    %39 = arith.cmpi eq, %7, %38 : vector<4x1xi32>
    %cst_10 = arith.constant 0.000000e+00 : f32
    %40 = vector.broadcast %37 : f32 to vector<4x1xf32>
    %41 = vector.broadcast %cst_10 : f32 to vector<4x1xf32>
    %42 = arith.select %39, %40, %41 : vector<4x1xi1>, vector<4x1xf32>
    %43 = arith.addf %25, %42 : vector<4x1xf32>
    %c2_i32 = arith.constant 2 : i32
    %44 = arith.index_cast %c2_i32 : i32 to index
    %45 = memref.load %arg3[%44] : memref<5xi32, #tpu.memory_space<smem>>
    %46 = arith.index_cast %c2_i32 : i32 to index
    %47 = memref.load %arg4[%46] : memref<5xi32, #tpu.memory_space<smem>>
    %48 = vector.broadcast %45 : i32 to vector<4x1xi32>
    %49 = arith.cmpi eq, %7, %48 : vector<4x1xi32>
    %cst_11 = arith.constant 0.000000e+00 : f32
    %50 = vector.broadcast %cst_11 : f32 to vector<4x1xf32>
    %51 = arith.select %49, %6, %50 : vector<4x1xi1>, vector<4x1xf32>
    %52 = vector.shape_cast %51 : vector<4x1xf32> to vector<1x4x1xf32>
    %cst_12 = arith.constant dense<0.000000e+00> : vector<1xf32>
    %53 = vector.multi_reduction <add>, %52, %cst_12 [1, 2] : vector<1x4x1xf32> to vector<1xf32>
    %54 = vector.shape_cast %53 : vector<1xf32> to vector<1x1x1xf32>
    %55 = vector.extract %54[0, 0, 0] : f32 from vector<1x1x1xf32>
    %56 = vector.broadcast %47 : i32 to vector<4x1xi32>
    %57 = arith.cmpi eq, %7, %56 : vector<4x1xi32>
    %cst_13 = arith.constant 0.000000e+00 : f32
    %58 = vector.broadcast %55 : f32 to vector<4x1xf32>
    %59 = vector.broadcast %cst_13 : f32 to vector<4x1xf32>
    %60 = arith.select %57, %58, %59 : vector<4x1xi1>, vector<4x1xf32>
    %61 = arith.addf %43, %60 : vector<4x1xf32>
    %c3_i32 = arith.constant 3 : i32
    %62 = arith.index_cast %c3_i32 : i32 to index
    %63 = memref.load %arg3[%62] : memref<5xi32, #tpu.memory_space<smem>>
    %64 = arith.index_cast %c3_i32 : i32 to index
    %65 = memref.load %arg4[%64] : memref<5xi32, #tpu.memory_space<smem>>
    %66 = vector.broadcast %63 : i32 to vector<4x1xi32>
    %67 = arith.cmpi eq, %7, %66 : vector<4x1xi32>
    %cst_14 = arith.constant 0.000000e+00 : f32
    %68 = vector.broadcast %cst_14 : f32 to vector<4x1xf32>
    %69 = arith.select %67, %6, %68 : vector<4x1xi1>, vector<4x1xf32>
    %70 = vector.shape_cast %69 : vector<4x1xf32> to vector<1x4x1xf32>
    %cst_15 = arith.constant dense<0.000000e+00> : vector<1xf32>
    %71 = vector.multi_reduction <add>, %70, %cst_15 [1, 2] : vector<1x4x1xf32> to vector<1xf32>
    %72 = vector.shape_cast %71 : vector<1xf32> to vector<1x1x1xf32>
    %73 = vector.extract %72[0, 0, 0] : f32 from vector<1x1x1xf32>
    %74 = vector.broadcast %65 : i32 to vector<4x1xi32>
    %75 = arith.cmpi eq, %7, %74 : vector<4x1xi32>
    %cst_16 = arith.constant 0.000000e+00 : f32
    %76 = vector.broadcast %73 : f32 to vector<4x1xf32>
    %77 = vector.broadcast %cst_16 : f32 to vector<4x1xf32>
    %78 = arith.select %75, %76, %77 : vector<4x1xi1>, vector<4x1xf32>
    %79 = arith.addf %61, %78 : vector<4x1xf32>
    %c4_i32 = arith.constant 4 : i32
    %80 = arith.index_cast %c4_i32 : i32 to index
    %81 = memref.load %arg3[%80] : memref<5xi32, #tpu.memory_space<smem>>
    %82 = arith.index_cast %c4_i32 : i32 to index
    %83 = memref.load %arg4[%82] : memref<5xi32, #tpu.memory_space<smem>>
    %84 = vector.broadcast %81 : i32 to vector<4x1xi32>
    %85 = arith.cmpi eq, %7, %84 : vector<4x1xi32>
    %cst_17 = arith.constant 0.000000e+00 : f32
    %86 = vector.broadcast %cst_17 : f32 to vector<4x1xf32>
    %87 = arith.select %85, %6, %86 : vector<4x1xi1>, vector<4x1xf32>
    %88 = vector.shape_cast %87 : vector<4x1xf32> to vector<1x4x1xf32>
    %cst_18 = arith.constant dense<0.000000e+00> : vector<1xf32>
    %89 = vector.multi_reduction <add>, %88, %cst_18 [1, 2] : vector<1x4x1xf32> to vector<1xf32>
    %90 = vector.shape_cast %89 : vector<1xf32> to vector<1x1x1xf32>
    %91 = vector.extract %90[0, 0, 0] : f32 from vector<1x1x1xf32>
    %92 = vector.broadcast %83 : i32 to vector<4x1xi32>
    %93 = arith.cmpi eq, %7, %92 : vector<4x1xi32>
    %cst_19 = arith.constant 0.000000e+00 : f32
    %94 = vector.broadcast %91 : f32 to vector<4x1xf32>
    %95 = vector.broadcast %cst_19 : f32 to vector<4x1xf32>
    %96 = arith.select %93, %94, %95 : vector<4x1xi1>, vector<4x1xf32>
    %97 = arith.addf %79, %96 : vector<4x1xf32>
    %c5_i32 = arith.constant 5 : i32
    %98 = vector.broadcast %97 : vector<4x1xf32> to vector<4x5xf32>
    %99 = vector.broadcast %2 : vector<1x5xf32> to vector<4x5xf32>
    %100 = arith.mulf %98, %99 : vector<4x5xf32>
    %c0_20 = arith.constant 0 : index
    %c0_21 = arith.constant 0 : index
    %101 = memref.load %arg5[%c0_20, %c0_21] : memref<1x1xf32, #tpu.memory_space<smem>>
    %102 = vector.broadcast %101 : f32 to vector<4x5xf32>
    %103 = arith.addf %100, %102 : vector<4x5xf32>
    %cst_22 = arith.constant 0.000000e+00 : f32
    %104 = vector.broadcast %cst_22 : f32 to vector<4x5xf32>
    %105 = arith.maximumf %103, %104 : vector<4x5xf32>
    %c0_23 = arith.constant 0 : index
    %c0_24 = arith.constant 0 : index
    %106 = vector.load %arg7[%c0_23, %c0_24] : memref<4x5xf32, #tpu.memory_space<vmem>>, vector<4x5xf32>
    tpu.vector_store %arg7[%c0_23, %c0_24], %105 {strides = array<i32>} : memref<4x5xf32, #tpu.memory_space<vmem>>, vector<4x5xf32>,
    %cst_25 = arith.constant dense<0.000000e+00> : vector<5xf32>
    %107 = vector.multi_reduction <add>, %105, %cst_25 [0] : vector<4x5xf32> to vector<5xf32>
    %108 = vector.shape_cast %107 : vector<5xf32> to vector<1x5xf32>
    %109 = arith.mulf %108, %108 : vector<1x5xf32>
    %110 = vector.shape_cast %109 : vector<1x5xf32> to vector<1x1x5xf32>
    %cst_26 = arith.constant dense<0.000000e+00> : vector<1xf32>
    %111 = vector.multi_reduction <add>, %110, %cst_26 [1, 2] : vector<1x1x5xf32> to vector<1xf32>
    %112 = vector.shape_cast %111 : vector<1xf32> to vector<1x1x1xf32>
    %113 = vector.extract %112[0, 0, 0] : f32 from vector<1x1x1xf32>
    %c0_27 = arith.constant 0 : index
    %c0_28 = arith.constant 0 : index
    %114 = memref.load %arg6[%c0_27, %c0_28] : memref<1x1xf32, #tpu.memory_space<smem>>
    %cst_29 = arith.constant 1.600000e+01 : f32
    %115 = arith.divf %113, %cst_29 : f32
    %116 = arith.subf %114, %115 : f32
    %cst_30 = arith.constant 5.000000e-01 : f32
    %117 = arith.mulf %cst_30, %116 : f32
    %c0_31 = arith.constant 0 : index
    %c0_32 = arith.constant 0 : index
    %118 = memref.load %arg8[%c0_31, %c0_32] : memref<1x1xf32, #tpu.memory_space<smem>>
    memref.store %117, %arg8[%c0_31, %c0_32] : memref<1x1xf32, #tpu.memory_space<smem>>
    return
  }
}

module attributes {stable_mosaic.version = 11 : i64} {
  func.func @decoder_kernel(%arg0: i32, %arg1: i32, %arg2: memref<4x5xf32, #tpu.memory_space<vmem>>, %arg3: memref<4x5xf32, #tpu.memory_space<vmem>>, %arg4: memref<4x4xf32, #tpu.memory_space<vmem>>) attributes {dimension_semantics = [#tpu.dimension_semantics<parallel>, #tpu.dimension_semantics<parallel>], iteration_bounds = array<i64: 1, 1>, scalar_prefetch = 0 : i64, scratch_operands = 0 : i64, tpu.core_type = #tpu.core_type<tc>, window_params = [{transform_indices = @transform_0, window_bounds = array<i64: 4, 5>}, {transform_indices = @transform_1, window_bounds = array<i64: 4, 5>}, {transform_indices = @transform_2, window_bounds = array<i64: 4, 4>}]} {
    %c0 = arith.constant 0 : index
    %c0_0 = arith.constant 0 : index
    %0 = vector.load %arg2[%c0, %c0_0] : memref<4x5xf32, #tpu.memory_space<vmem>>, vector<4x5xf32>
    %c0_1 = arith.constant 0 : index
    %c0_2 = arith.constant 0 : index
    %1 = vector.load %arg3[%c0_1, %c0_2] : memref<4x5xf32, #tpu.memory_space<vmem>>, vector<4x5xf32>
    %cst = arith.constant dense<0.000000e+00> : vector<4x4xf32>
    %2 = tpu.matmul %0, %1, %cst {dimension_numbers = #tpu.dot_dimension_numbers<[1], [1], [0], [0], [0, 0, 1, 0], [], []>} : vector<4x5xf32>, vector<4x5xf32>, vector<4x4xf32> -> vector<4x4xf32>
    %3 = arith.negf %2 : vector<4x4xf32>
    %4 = math.exp %3 : vector<4x4xf32>
    %cst_3 = arith.constant 1.000000e+00 : f32
    %5 = vector.broadcast %cst_3 : f32 to vector<4x4xf32>
    %6 = arith.addf %5, %4 : vector<4x4xf32>
    %7 = arith.divf %5, %6 : vector<4x4xf32>
    %c0_4 = arith.constant 0 : index
    %c0_5 = arith.constant 0 : index
    %8 = vector.load %arg4[%c0_4, %c0_5] : memref<4x4xf32, #tpu.memory_space<vmem>>, vector<4x4xf32>
    tpu.vector_store %arg4[%c0_4, %c0_5], %7 {strides = array<i32>} : memref<4x4xf32, #tpu.memory_space<vmem>>, vector<4x4xf32>,
    return
  }
  func.func @transform_0(%arg0: i32, %arg1: i32) -> (i32, i32) {
    %c0_i32 = arith.constant 0 : i32
    %c0_i32_0 = arith.constant 0 : i32
    return %arg0, %c0_i32 : i32, i32
  }
  func.func @transform_1(%arg0: i32, %arg1: i32) -> (i32, i32) {
    %c0_i32 = arith.constant 0 : i32
    %c0_i32_0 = arith.constant 0 : i32
    return %arg1, %c0_i32 : i32, i32
  }
  func.func @transform_2(%arg0: i32, %arg1: i32) -> (i32, i32) {
    %c0_i32 = arith.constant 0 : i32
    return %arg0, %arg1 : i32, i32
  }
}

</mosaic_0001>

<llo_original>
// kernel: custom_gae_forward.2
$region0: #{custom_gae_forward.2}
  #allocation0 [shape = 'u32[]', space=smem, size = 0x4, offset = 0x4, fixed_abs, tag = 'smem constant byte address 0x4 - core index']
  #allocation1 [shape = 'u32[144,128]{1,0:T(1,128)}', space=vmem, size = 0x12000, scoped, tag = 'internal scratch']
  #allocation2 [shape = 'f32[1,1]{1,0:T(1,128)S(6)}', space=smem, size = 0x200, scoped, tag = 'scoped memory for custom_gae_forward.2']
  #allocation3 [shape = 'f32[1,1]{1,0:T(1,128)S(6)}', space=smem, size = 0x200, scoped, tag = 'scoped memory for custom_gae_forward.2']
  %s0 = inlined_call_operand.vmem [shape: f32[4,5], index: 0, kind: input, shape index: {}]
  %s1 = inlined_call_operand.vmem [shape: f32[1,5], index: 1, kind: input, shape index: {}]
  %s2 = inlined_call_operand.vmem [shape: f32[1,5], index: 2, kind: input, shape index: {}]
  %s3 = inlined_call_operand.vmem [shape: s32[5], index: 3, kind: input, shape index: {}]
  %s4 = inlined_call_operand.vmem [shape: s32[5], index: 4, kind: input, shape index: {}]
  %s5 = inlined_call_operand.<no memory space> [shape: f32[1,1], index: 5, kind: input, shape index: {}]
  %s6 = inlined_call_operand.<no memory space> [shape: f32[1,1], index: 6, kind: input, shape index: {}]
  %s7 = inlined_call_operand.vmem [shape: f32[4,5], index: 7, kind: output, shape index: {0}]
  %s8 = inlined_call_operand.hbm [shape: f32[1,1], index: 8, kind: output, shape index: {1}]
  %9 = xla_tuple %s7, %s8
  %s10 = sld [smem:[#allocation0]]
  $region54: #{custom_gae_forward.2} parent=0
    _
  %s12 = ssub.s32 1, %s10
  %s13 = scalar_select 0, %s12, %s10
  %14 = sst [smem:[#allocation2]] %s5
  %15 = sst [smem:[#allocation3]] %s6
  $region1: #{custom_gae_forward.2} parent=0
    #allocation4 [shape = 'u8[512]{0}', space=smem, size = 0x200, scoped, tag = 'input window, operand 3, single buffered']
    #allocation5 [shape = 's32[1]{0}', space=sflag, size = 0x4, scoped, tag = 'scoped memory for custom_gae_forward.2']
    #allocation6 [shape = 's32[1]{0}', space=sflag, size = 0x4, scoped, tag = 'scoped memory for custom_gae_forward.2']
    #allocation7 [shape = 'u8[512]{0}', space=smem, size = 0x200, scoped, tag = 'input window, operand 4, single buffered']
    #allocation8 [shape = 's32[1]{0}', space=sflag, size = 0x4, scoped, tag = 'scoped memory for custom_gae_forward.2']
    #allocation9 [shape = 'u8[512]{0}', space=smem, size = 0x200, scoped, tag = 'output window, operand 1, single buffered']
    %16 = vsyncpa [#allocation6], 0
    %17 = vsyncpa [#allocation8], 0
    %18 = vsyncpa [#allocation5], 0
    // Predicated region
    $region2: #{custom_gae_forward.2} parent=1 // pred_check
      _
    $region3: #{custom_gae_forward.2} parent=1 // pred_check_branch
      %20 = sbr.rel (0) target = $region5
    $region4: #{custom_gae_forward.2} parent=1 // pred_region
      _
    $region5: #{custom_gae_forward.2} parent=1 // pred_fallthru
      _
    // Predicated region
    $region6: #{custom_gae_forward.2} parent=1 // pred_check
      _
    $region7: #{custom_gae_forward.2} parent=1 // pred_check_branch
      %22 = sbr.rel (0) target = $region9
    $region8: #{custom_gae_forward.2} parent=1 // pred_region
      _
    $region9: #{custom_gae_forward.2} parent=1 // pred_fallthru
      _
    // Predicated region
    $region10: #{custom_gae_forward.2} parent=1 // pred_check
      _
    $region11: #{custom_gae_forward.2} parent=1 // pred_check_branch
      %24 = sbr.rel (0) target = $region13
    $region12: #{custom_gae_forward.2} parent=1 // pred_region
      _
    $region13: #{custom_gae_forward.2} parent=1 // pred_fallthru
      _
    // Predicated region
    $region14: #{custom_gae_forward.2} parent=1 // pred_check
      _
    $region15: #{custom_gae_forward.2} parent=1 // pred_check_branch
      %26 = sbr.rel (0) target = $region17
    $region16: #{custom_gae_forward.2} parent=1 // pred_region
      %s28 = ssub.s32 16, 16
      %29 = vsyncadd [#allocation6], %s28
      %s31 = sshll.u32 %s3, 4
      %s32 = int_to_ptr.vmem [resolvable:$true] %s31
      %34 = dma.vmem_to_smem %s32, 16, [#allocation4], [#allocation6]
    $region17: #{custom_gae_forward.2} parent=1 // pred_fallthru
      _
    // Predicated region
    $region18: #{custom_gae_forward.2} parent=1 // pred_check
      _
    $region19: #{custom_gae_forward.2} parent=1 // pred_check_branch
      %36 = sbr.rel (0) target = $region21
    $region20: #{custom_gae_forward.2} parent=1 // pred_region
      %s38 = ssub.s32 16, 16
      %39 = vsyncadd [#allocation8], %s38
      %s41 = sshll.u32 %s4, 4
      %s42 = int_to_ptr.vmem [resolvable:$true] %s41
      %44 = dma.vmem_to_smem %s42, 16, [#allocation7], [#allocation8]
    $region21: #{custom_gae_forward.2} parent=1 // pred_fallthru
      _
    // Predicated region
    $region22: #{custom_gae_forward.2} parent=1 // pred_check
      _
    $region23: #{custom_gae_forward.2} parent=1 // pred_check_branch
      %46 = sbr.rel (0) target = $region25
    $region24: #{custom_gae_forward.2} parent=1 // pred_region
      _
    $region25: #{custom_gae_forward.2} parent=1 // pred_fallthru
      _
    // Predicated region
    $region26: #{custom_gae_forward.2} parent=1 // pred_check
      _
    $region27: #{custom_gae_forward.2} parent=1 // pred_check_branch
      %48 = sbr.rel (0) target = $region29
    $region28: #{custom_gae_forward.2} parent=1 // pred_region
      _
    $region29: #{custom_gae_forward.2} parent=1 // pred_fallthru
      _
    // Predicated region
    $region30: #{custom_gae_forward.2} parent=1 // pred_check
      _
    $region31: #{custom_gae_forward.2} parent=1 // pred_check_branch
      %50 = sbr.rel (0) target = $region33
    $region32: #{custom_gae_forward.2} parent=1 // pred_region
      %51 = dma.done [#allocation6], 16
    $region33: #{custom_gae_forward.2} parent=1 // pred_fallthru
      _
    // Predicated region
    $region34: #{custom_gae_forward.2} parent=1 // pred_check
      _
    $region35: #{custom_gae_forward.2} parent=1 // pred_check_branch
      %53 = sbr.rel (0) target = $region37
    $region36: #{custom_gae_forward.2} parent=1 // pred_region
      %54 = dma.done [#allocation8], 16
    $region37: #{custom_gae_forward.2} parent=1 // pred_fallthru
      _
    %55 = sfence
    %v56 = vld [vmem:[%s0] sm:$0xf]
    %v57 = vld [vmem:[%s1] sm:$0x1]
    %v58 = vld [vmem:[%s2] sm:$0x1]
    %v60 = vlaneseq
    %v61 = vshrl.u32 %v60, 7
    %v62 = vsub.s32 0, %v61
    %v63 = vrot.slane %v57, %v62
    %v65 = vmul.f32 %v56, %v63
    %vm66 = vcmask 35840
    %v67 = vsel %vm66, %v65, 0.0
    %68 = vadd.xlane.f32.xlu0 %v67
    %v69 = vpop.xlane.xlu0 %68
    %v70 = vlaneseq
    %v71 = vshrl.u32 %v70, 7
    %s72 = sld [smem:[#allocation4]]
    %s73 = sld [smem:[#allocation7]]
    %v74 = vstv %s72
    %vm75 = vcmp.eq.s32.totalorder %v71, %v74
    %v76 = vsel %vm75, %v69, 0.0
    %vm77 = vcmask 3072
    %v78 = vsel %vm77, %v76, 0.0
    %79 = vadd.xlane.f32.xlu0 %v78
    %v80 = vpop.xlane.xlu0 %79
    %v81 = vrot.slane %v80, 4
    %v82 = vadd.f32 %v80, %v81
    %v83 = vrot.slane %v82, 2
    %v84 = vadd.f32 %v82, %v83
    %v85 = vrot.slane %v84, 1
    %v86 = vadd.f32 %v84, %v85
    %s87 = vtos %v86
    %v88 = vstv %s73
    %vm89 = vcmp.eq.s32.totalorder %v71, %v88
    %v90 = vstv %s87
    %v91 = vsel %vm89, %v90, 0.0
    %v92 = vadd.f32 %v69, %v91
    %s93 = sld [smem:[#allocation4 + $0x1]]
    %s94 = sld [smem:[#allocation7 + $0x1]]
    %v95 = vstv %s93
    %vm96 = vcmp.eq.s32.totalorder %v71, %v95
    %v97 = vsel %vm96, %v69, 0.0
    %v98 = vsel %vm77, %v97, 0.0
    %99 = vadd.xlane.f32.xlu0 %v98
    %v100 = vpop.xlane.xlu0 %99
    %v101 = vrot.slane %v100, 4
    %v102 = vadd.f32 %v100, %v101
    %v103 = vrot.slane %v102, 2
    %v104 = vadd.f32 %v102, %v103
    %v105 = vrot.slane %v104, 1
    %v106 = vadd.f32 %v104, %v105
    %s107 = vtos %v106
    %v108 = vstv %s94
    %vm109 = vcmp.eq.s32.totalorder %v71, %v108
    %v110 = vstv %s107
    %v111 = vsel %vm109, %v110, 0.0
    %v112 = vadd.f32 %v92, %v111
    %s113 = sld [smem:[#allocation4 + $0x2]]
    %s114 = sld [smem:[#allocation7 + $0x2]]
    %v115 = vstv %s113
    %vm116 = vcmp.eq.s32.totalorder %v71, %v115
    %v117 = vsel %vm116, %v69, 0.0
    %v118 = vsel %vm77, %v117, 0.0
    %119 = vadd.xlane.f32.xlu0 %v118
    %v120 = vpop.xlane.xlu0 %119
    %v121 = vrot.slane %v120, 4
    %v122 = vadd.f32 %v120, %v121
    %v123 = vrot.slane %v122, 2
    %v124 = vadd.f32 %v122, %v123
    %v125 = vrot.slane %v124, 1
    %v126 = vadd.f32 %v124, %v125
    %s127 = vtos %v126
    %v128 = vstv %s114
    %vm129 = vcmp.eq.s32.totalorder %v71, %v128
    %v130 = vstv %s127
    %v131 = vsel %vm129, %v130, 0.0
    %v132 = vadd.f32 %v112, %v131
    %s133 = sld [smem:[#allocation4 + $0x3]]
    %s134 = sld [smem:[#allocation7 + $0x3]]
    %v135 = vstv %s133
    %vm136 = vcmp.eq.s32.totalorder %v71, %v135
    %v137 = vsel %vm136, %v69, 0.0
    %v138 = vsel %vm77, %v137, 0.0
    %139 = vadd.xlane.f32.xlu0 %v138
    %v140 = vpop.xlane.xlu0 %139
    %v141 = vrot.slane %v140, 4
    %v142 = vadd.f32 %v140, %v141
    %v143 = vrot.slane %v142, 2
    %v144 = vadd.f32 %v142, %v143
    %v145 = vrot.slane %v144, 1
    %v146 = vadd.f32 %v144, %v145
    %s147 = vtos %v146
    %v148 = vstv %s134
    %vm149 = vcmp.eq.s32.totalorder %v71, %v148
    %v150 = vstv %s147
    %v151 = vsel %vm149, %v150, 0.0
    %v152 = vadd.f32 %v132, %v151
    %s153 = sld [smem:[#allocation4 + $0x4]]
    %s154 = sld [smem:[#allocation7 + $0x4]]
    %v155 = vstv %s153
    %vm156 = vcmp.eq.s32.totalorder %v71, %v155
    %v157 = vsel %vm156, %v69, 0.0
    %v158 = vsel %vm77, %v157, 0.0
    %159 = vadd.xlane.f32.xlu0 %v158
    %v160 = vpop.xlane.xlu0 %159
    %v161 = vrot.slane %v160, 4
    %v162 = vadd.f32 %v160, %v161
    %v163 = vrot.slane %v162, 2
    %v164 = vadd.f32 %v162, %v163
    %v165 = vrot.slane %v164, 1
    %v166 = vadd.f32 %v164, %v165
    %s167 = vtos %v166
    %v168 = vstv %s154
    %vm169 = vcmp.eq.s32.totalorder %v71, %v168
    %v170 = vstv %s167
    %v171 = vsel %vm169, %v170, 0.0
    %v172 = vadd.f32 %v152, %v171
    %v174 = vlaneseq
    %v175 = vshrl.u32 %v174, 7
    %v176 = vsub.s32 0, %v175
    %v177 = vrot.slane %v58, %v176
    %v179 = vmul.f32 %v172, %v177
    %s180 = sld [smem:[#allocation2]]
    %v181 = vstv %s180
    %v182 = vadd.f32 %v179, %v181
    %v183 = vmax.f32 %v182, 0.0
    %184 = vst.msk [vmem:[%s7] sm:$0xf] %vm66, %v183
    %v185 = vsel %vm66, %v183, 0.0
    %v186 = vrot.slane %v185, 4
    %v187 = vadd.f32 %v185, %v186
    %v188 = vrot.slane %v187, 2
    %v189 = vadd.f32 %v187, %v188
    %v190 = vrot.slane %v189, 1
    %v191 = vadd.f32 %v189, %v190
    %v192 = vmul.f32 %v191, %v191
    %vm193 = vcmask 32768
    %v194 = vsel %vm193, %v192, 0.0
    %195 = vadd.xlane.f32.xlu0 %v194
    %v196 = vpop.xlane.xlu0 %195
    %v197 = vrot.slane %v196, 4
    %v198 = vadd.f32 %v196, %v197
    %v199 = vrot.slane %v198, 2
    %v200 = vadd.f32 %v198, %v199
    %v201 = vrot.slane %v200, 1
    %v202 = vadd.f32 %v200, %v201
    %s203 = vtos %v202
    %s204 = sld [smem:[#allocation3]]
    %v205 = vrcp.pop 16.0
    %s206 = vtos %v205
    %s207 = smul.f32 %s203, %s206
    %s208 = ssub.f32 %s204, %s207
    %s209 = smul.f32 %s208, 0.5
    %s210 = scalar_lea.smem [#allocation9], 0
    %211 = sst [smem:[%s210]] %s209
    // Predicated region
    $region38: #{custom_gae_forward.2} parent=1 // pred_check
      _
    $region39: #{custom_gae_forward.2} parent=1 // pred_check_branch
      %213 = sbr.rel (0) target = $region41
    $region40: #{custom_gae_forward.2} parent=1 // pred_region
      _
    $region41: #{custom_gae_forward.2} parent=1 // pred_fallthru
      _
    // Predicated region
    $region42: #{custom_gae_forward.2} parent=1 // pred_check
      _
    $region43: #{custom_gae_forward.2} parent=1 // pred_check_branch
      %215 = sbr.rel (0) target = $region45
    $region44: #{custom_gae_forward.2} parent=1 // pred_region
      %s217 = ssub.s32 16, 16
      %218 = vsyncadd [#allocation5], %s217
      %221 = dma.smem_to_hbm [#allocation9], 16, %s8, [#allocation5]
    $region45: #{custom_gae_forward.2} parent=1 // pred_fallthru
      _
    // Predicated region
    $region46: #{custom_gae_forward.2} parent=1 // pred_check
      _
    $region47: #{custom_gae_forward.2} parent=1 // pred_check_branch
      %223 = sbr.rel (0) target = $region49
    $region48: #{custom_gae_forward.2} parent=1 // pred_region
      _
    $region49: #{custom_gae_forward.2} parent=1 // pred_fallthru
      _
    // Predicated region
    $region50: #{custom_gae_forward.2} parent=1 // pred_check
      _
    $region51: #{custom_gae_forward.2} parent=1 // pred_check_branch
      %225 = sbr.rel (0) target = $region53
    $region52: #{custom_gae_forward.2} parent=1 // pred_region
      %226 = dma.done [#allocation5], 16
    $region53: #{custom_gae_forward.2} parent=1 // pred_fallthru
      _
    %227 = sfence
    %228 = vsyncpa [#allocation5], 1
    %229 = vsyncpa [#allocation6], 1
    %230 = vsyncpa [#allocation8], 1

// kernel: custom_gae_forward.3
$region0: #{custom_gae_forward.3}
  #allocation0 [shape = 'u32[]', space=smem, size = 0x4, offset = 0x4, fixed_abs, tag = 'smem constant byte address 0x4 - core index']
  #allocation1 [shape = 'u32[144,128]{1,0:T(1,128)}', space=vmem, size = 0x12000, scoped, tag = 'internal scratch']
  %s0 = inlined_call_operand.vmem [shape: f32[4,5], index: 0, kind: input, shape index: {}, may-alias: {0,1}]
  %s1 = inlined_call_operand.vmem [shape: f32[4,5], index: 1, kind: input, shape index: {}, may-alias: {0,1}]
  %s2 = inlined_call_operand.hbm [shape: f32[4,4], index: 2, kind: output, shape index: {}]
  %s3 = sld [smem:[#allocation0]]
  $region18: #{custom_gae_forward.3} parent=0
    _
  %s5 = ssub.s32 1, %s3
  %s6 = scalar_select 0, %s5, %s3
  $region1: #{custom_gae_forward.3} parent=0
    #allocation2 [shape = 'u8[2048]{0}', space=vmem, size = 0x800, scoped, tag = 'output window, operand 0, single buffered']
    #allocation3 [shape = 's32[1]{0}', space=sflag, size = 0x4, scoped, tag = 'scoped memory for custom_gae_forward.3']
    %7 = vsyncpa [#allocation3], 0
    // Predicated region
    $region2: #{custom_gae_forward.3} parent=1 // pred_check
      _
    $region3: #{custom_gae_forward.3} parent=1 // pred_check_branch
      %9 = sbr.rel (0) target = $region5
    $region4: #{custom_gae_forward.3} parent=1 // pred_region
      _
    $region5: #{custom_gae_forward.3} parent=1 // pred_fallthru
      _
    // Predicated region
    $region6: #{custom_gae_forward.3} parent=1 // pred_check
      _
    $region7: #{custom_gae_forward.3} parent=1 // pred_check_branch
      %11 = sbr.rel (0) target = $region9
    $region8: #{custom_gae_forward.3} parent=1 // pred_region
      _
    $region9: #{custom_gae_forward.3} parent=1 // pred_fallthru
      _
    %v12 = vld [vmem:[%s0] sm:$0xf]
    %v13 = vld [vmem:[%s1] sm:$0xf]
    %vm14 = vcmask 39936
    %v16 = vsel %vm14, %v12, 0
    %v19 = vsel %vm14, %v13, 0
    %21 = vmatprep.subr.mxu0 0.0
    %22 = vmatpush1.xpose.msra.mxu0 %v19
    %23 = vmatprep.subr.mxu0 0.0
    %24 = vmatpush1.xpose.msra.mxu0 0.0
    %25 = vmatprep.subr.mxu0 0.0
    %26 = vmatpush1.xpose.msra.mxu0 0.0
    %27 = vmatprep.subr.mxu0 0.0
    %28 = vmatpush1.xpose.msra.mxu0 0.0
    %29 = vmatprep.subr.mxu0 0.0
    %30 = vmatpush1.xpose.msra.mxu0 0.0
    %31 = vmatprep.subr.mxu0 0.0
    %32 = vmatpush1.xpose.msra.mxu0 0.0
    %33 = vmatprep.subr.mxu0 0.0
    %34 = vmatpush1.xpose.msra.mxu0 0.0
    %35 = vmatprep.subr.mxu0 0.0
    %36 = vmatpush1.xpose.msra.mxu0 0.0
    %37 = vmatprep.subr.mxu0 0.0
    %38 = vmatpush1.xpose.msra.mxu0 0.0
    %39 = vmatprep.subr.mxu0 0.0
    %40 = vmatpush1.xpose.msra.mxu0 0.0
    %41 = vmatprep.subr.mxu0 0.0
    %42 = vmatpush1.xpose.msra.mxu0 0.0
    %43 = vmatprep.subr.mxu0 0.0
    %44 = vmatpush1.xpose.msra.mxu0 0.0
    %45 = vmatprep.subr.mxu0 0.0
    %46 = vmatpush1.xpose.msra.mxu0 0.0
    %47 = vmatprep.subr.mxu0 0.0
    %48 = vmatpush1.xpose.msra.mxu0 0.0
    %49 = vmatprep.subr.mxu0 0.0
    %50 = vmatpush1.xpose.msra.mxu0 0.0
    %51 = vmatprep.subr.mxu0 0.0
    %52 = vmatpush1.xpose.msra.mxu0 0.0
    %53 = vmatprep.subr.mxu0 0.0
    %54 = vmatpush1.xpose.msra.mxu0 0.0
    %55 = vmatprep.subr.mxu0 0.0
    %56 = vmatpush1.xpose.msra.mxu0 0.0
    %57 = vmatprep.subr.mxu0 0.0
    %58 = vmatpush1.xpose.msra.mxu0 0.0
    %59 = vmatprep.subr.mxu0 0.0
    %60 = vmatpush1.xpose.msra.mxu0 0.0
    %61 = vmatprep.subr.mxu0 0.0
    %62 = vmatpush1.xpose.msra.mxu0 0.0
    %63 = vmatprep.subr.mxu0 0.0
    %64 = vmatpush1.xpose.msra.mxu0 0.0
    %65 = vmatprep.subr.mxu0 0.0
    %66 = vmatpush1.xpose.msra.mxu0 0.0
    %67 = vmatprep.subr.mxu0 0.0
    %68 = vmatpush1.xpose.msra.mxu0 0.0
    %69 = vmatprep.subr.mxu0 0.0
    %70 = vmatpush1.xpose.msra.mxu0 0.0
    %71 = vmatprep.subr.mxu0 0.0
    %72 = vmatpush1.xpose.msra.mxu0 0.0
    %73 = vmatprep.subr.mxu0 0.0
    %74 = vmatpush1.xpose.msra.mxu0 0.0
    %75 = vmatprep.subr.mxu0 0.0
    %76 = vmatpush1.xpose.msra.mxu0 0.0
    %77 = vmatprep.subr.mxu0 0.0
    %78 = vmatpush1.xpose.msra.mxu0 0.0
    %79 = vmatprep.subr.mxu0 0.0
    %80 = vmatpush1.xpose.msra.mxu0 0.0
    %81 = vmatprep.subr.mxu0 0.0
    %82 = vmatpush1.xpose.msra.mxu0 0.0
    %83 = vmatprep.subr.mxu0 0.0
    %84 = vmatpush1.xpose.msra.mxu0 0.0
    %85 = vmatprep.mubr.f32.mxu0 0.0
    %86 = vmatmul.mubr.f32.gmra.mrb[0].mxu0 %v16
    %v87 = vpop.f32.mrb[0].mxu0
    %v88 = vadd.f32 0.0, %v87
    %v89 = vpop.f32.mrb[0].mxu0
    %90 = vdwg.mxu0
    %v91 = vxor.u32 %v88, 2147483648
    %v92 = vmul.f32 %v91, 1.442695
    %v93 = vpow.pop %v92
    %v94 = vadd.f32 %v93, 1.0
    %v95 = vrcp.pop %v94
    %v96 = vmul.f32 1.0, %v95
    %vm97 = vcmask 27648
    %98 = vst.msk [vmem:[#allocation2] sm:$0xf] %vm97, %v96
    // Predicated region
    $region10: #{custom_gae_forward.3} parent=1 // pred_check
      _
    $region11: #{custom_gae_forward.3} parent=1 // pred_check_branch
      %100 = sbr.rel (0) target = $region13
    $region12: #{custom_gae_forward.3} parent=1 // pred_region
      %s102 = ssub.s32 64, 64
      %103 = vsyncadd [#allocation3], %s102
      %s105 = sshll.u32 [#allocation2], 4
      %s106 = int_to_ptr.vmem [resolvable:$true] %s105
      %108 = dma.vmem_to_hbm [thread:$0]  %s106, 64, %s2, [#allocation3]
    $region13: #{custom_gae_forward.3} parent=1 // pred_fallthru
      _
    // Predicated region
    $region14: #{custom_gae_forward.3} parent=1 // pred_check
      _
    $region15: #{custom_gae_forward.3} parent=1 // pred_check_branch
      %110 = sbr.rel (0) target = $region17
    $region16: #{custom_gae_forward.3} parent=1 // pred_region
      %111 = dma.done [#allocation3], 64
    $region17: #{custom_gae_forward.3} parent=1 // pred_fallthru
      _
    %112 = vsyncpa [#allocation3], 1

</llo_original>
